<compile_context>
chip_gen: v7x
topology: tpu7x:2x2x1
jax: 0.10.0
libtpu: 0.0.40
codegen_flags: <defaults>
</compile_context>

<pallas_src>
import math

import jax
import jax.numpy as jnp
from jax.experimental import pallas as pl
from jax.experimental.pallas import tpu as pltpu


# ---------------- pe table construction (identical to torch __init__) ----------------
def build_pe_table(max_len: int, d_model: int, dtype=jnp.float32) -> jnp.ndarray:
    position = jnp.arange(max_len, dtype=jnp.float32)[:, None]               # (L, 1)
    div_term = jnp.exp(
        jnp.arange(0, d_model, 2, dtype=jnp.float32)
        * -(math.log(10000.0) / d_model)
    )                                                                        # (D/2,)
    angles = position * div_term                                             # (L, D/2)
    pe = jnp.zeros((max_len, d_model), jnp.float32)
    pe = pe.at[:, 0::2].set(jnp.sin(angles))
    pe = pe.at[:, 1::2].set(jnp.cos(angles))
    return pe.astype(dtype)


# ---------------- kernel (shared by both paths) ----------------
def _pe_add_kernel(x_ref, pe_ref, o_ref):
    # pe_ref has a leading dim of 1 and broadcasts over the batch dimension.
    o_ref[...] = x_ref[...] + pe_ref[...]


# ---------------- grid-less path (small problems; whole arrays in VMEM) ----------------
def _pe_add_small(x2d: jnp.ndarray, pe2d: jnp.ndarray) -> jnp.ndarray:
    b, sd = x2d.shape
    itemsize = jnp.dtype(x2d.dtype).itemsize
    return pl.pallas_call(
        _pe_add_kernel,
        out_shape=jax.ShapeDtypeStruct((b, sd), x2d.dtype),
        in_specs=[
            pl.BlockSpec(memory_space=pltpu.MemorySpace.VMEM),   # x slab
            pl.BlockSpec(memory_space=pltpu.MemorySpace.VMEM),   # pe slab
        ],
        out_specs=pl.BlockSpec(memory_space=pltpu.MemorySpace.VMEM),
        input_output_aliases={0: 0},                             # out reuses x's buffer
        cost_estimate=pl.CostEstimate(
            flops=b * sd,
            transcendentals=0,
            bytes_accessed=(2 * b * sd + sd) * itemsize,
        ),
    )(x2d, pe2d)


# ---------------- sequence-tiled path (real module sizes) ----------------
def _pe_add_tiled(x: jnp.ndarray, pe3d: jnp.ndarray, ts: int) -> jnp.ndarray:
    b, s, d = x.shape
    itemsize = jnp.dtype(x.dtype).itemsize
    return pl.pallas_call(
        _pe_add_kernel,
        out_shape=jax.ShapeDtypeStruct((b, s, d), x.dtype),
        grid=(pl.cdiv(s, ts),),
        in_specs=[
            pl.BlockSpec((b, ts, d), lambda i: (0, i, 0)),       # x block, lane-dense
            pl.BlockSpec((1, ts, d), lambda i: (0, i, 0)),       # pe block (batch bcast)
        ],
        out_specs=pl.BlockSpec((b, ts, d), lambda i: (0, i, 0)),
        input_output_aliases={0: 0},
        compiler_params=pltpu.CompilerParams(
            dimension_semantics=("parallel",),                   # shards over v7x's 2 TCs
            vmem_limit_bytes=32 * 1024 * 1024,                   # explicit, v7x-safe
        ),
        cost_estimate=pl.CostEstimate(
            flops=b * s * d,
            transcendentals=0,
            bytes_accessed=(2 * b * s + s) * d * itemsize,
        ),
    )(x, pe3d)


# ---------------- module wrapper ----------------
_SMALL_BYTES_LIMIT = 4 * 1024 * 1024  # use grid-less full-slab path below this x size


class PositionalEncoding:
    def __init__(self, d_model: int, dropout: float, max_len: int = 5000,
                 dtype=jnp.float32):
        del dropout  # inference: identity.  TODO(synk): training-mode dropout mask.
        self.d_model = d_model
        self.max_len = max_len
        self.pe = build_pe_table(max_len, d_model, dtype)        # (max_len, d_model)
        self._pe_cache = {}                                      # (s, small) -> slab
        self._forward = jax.jit(self._forward_impl)

    @staticmethod
    def _is_small(b: int, s: int, d: int, itemsize: int) -> bool:
        return b * s * d * itemsize <= _SMALL_BYTES_LIMIT

    def _pe_slab(self, b: int, s: int, d: int, itemsize: int) -> jnp.ndarray:
        # Hoisted out of the per-call path: slice + reshape happen once per
        # (seq_len, path) and the resulting device array is reused thereafter.
        small = self._is_small(b, s, d, itemsize)
        key = (s, small)
        if key not in self._pe_cache:
            pe_s = self.pe[:s]
            slab = pe_s.reshape(1, s * d) if small else pe_s.reshape(1, s, d)
            self._pe_cache[key] = slab
        return self._pe_cache[key]

    @staticmethod
    def _forward_impl(x, pe_slab):
        b, s, d = x.shape
        if pe_slab.ndim == 2:
            # Grid-less, whole-array-in-VMEM path (lane-dense (B, S*D) slab).
            out2d = _pe_add_small(x.reshape(b, s * d), pe_slab)
            return out2d.reshape(b, s, d)
        # Sequence-tiled path for large shapes: ~2 MiB per input block,
        # ts a multiple of 8 so the (8, 128) tiling constraint holds.
        itemsize = jnp.dtype(x.dtype).itemsize
        target_bytes = 2 * 1024 * 1024
        ts = (target_bytes // (b * d * itemsize)) // 8 * 8
        ts = int(max(8, min(s, ts)))
        return _pe_add_tiled(x, pe_slab, ts)

    def __call__(self, x: jnp.ndarray) -> jnp.ndarray:
        b, s, d = x.shape
        assert d == self.d_model and s <= self.max_len
        itemsize = jnp.dtype(x.dtype).itemsize
        pe_slab = self._pe_slab(b, s, d, itemsize)
        return self._forward(x, pe_slab)


# ---------------- test ----------------
if __name__ == "__main__":
    B, S, D_MODEL, MAX_LEN = 2, 8, 32, 64   # small shapes consistent with the module
    key = jax.random.PRNGKey(0)
    x = jax.random.normal(key, (B, S, D_MODEL), dtype=jnp.float32)

    module = PositionalEncoding(d_model=D_MODEL, dropout=0.1, max_len=MAX_LEN)

    out = jax.block_until_ready(module(x))

    # pure-JAX reference: x + pe[:, :seq] (dropout is identity at inference)
    ref = jax.block_until_ready(x + module.pe[None, :S, :])

    assert out.shape == (B, S, D_MODEL)
    assert jnp.allclose(out, ref, rtol=1e-6, atol=1e-6), "mismatch vs reference"

    print("KERNEL_OK")
</pallas_src>

<mosaic_0001>
module attributes {stable_mosaic.version = 11 : i64} {
  func.func @_pe_add_kernel(%arg0: memref<2x256xf32, #tpu.memory_space<vmem>>, %arg1: memref<1x256xf32, #tpu.memory_space<vmem>>, %arg2: memref<2x256xf32, #tpu.memory_space<vmem>>) attributes {dimension_semantics = [], scalar_prefetch = 0 : i64, scratch_operands = 0 : i64, tpu.core_type = #tpu.core_type<tc>} {
    %c0 = arith.constant 0 : index
    %c0_0 = arith.constant 0 : index
    %0 = vector.load %arg0[%c0, %c0_0] : memref<2x256xf32, #tpu.memory_space<vmem>>, vector<2x256xf32>
    %c0_1 = arith.constant 0 : index
    %c0_2 = arith.constant 0 : index
    %1 = vector.load %arg1[%c0_1, %c0_2] : memref<1x256xf32, #tpu.memory_space<vmem>>, vector<1x256xf32>
    %2 = vector.broadcast %1 : vector<1x256xf32> to vector<2x256xf32>
    %3 = arith.addf %0, %2 : vector<2x256xf32>
    %c0_3 = arith.constant 0 : index
    %c0_4 = arith.constant 0 : index
    %4 = vector.load %arg2[%c0_3, %c0_4] : memref<2x256xf32, #tpu.memory_space<vmem>>, vector<2x256xf32>
    tpu.vector_store %arg2[%c0_3, %c0_4], %3 {strides = array<i32>} : memref<2x256xf32, #tpu.memory_space<vmem>>, vector<2x256xf32>,
    return
  }
}

</mosaic_0001>

<llo_original>
// kernel: _forward_impl.1
$region0: #{_forward_impl.1}
  #allocation0 [shape = 'u32[]', space=smem, size = 0x4, offset = 0x4, fixed_abs, tag = 'smem constant byte address 0x4 - core index']
  #allocation1 [shape = 'u32[144,128]{1,0:T(1,128)}', space=vmem, size = 0x12000, scoped, tag = 'internal scratch']
  %s0 = inlined_call_operand.vmem [shape: f32[2,256], index: 0, kind: input, shape index: {}, may-alias: {0,2}]
  %s1 = inlined_call_operand.vmem [shape: f32[1,256], index: 1, kind: input, shape index: {}]
  %s2 = inlined_call_operand.vmem [shape: f32[2,256], index: 2, kind: output, shape index: {}, may-alias: {0,2}]
  %s3 = sld [smem:[#allocation0]]
  $region18: #{_forward_impl.1} parent=0
    _
  %s5 = ssub.s32 1, %s3
  %s6 = scalar_select 0, %s5, %s3
  // Predicated region
  $region2: #{_forward_impl.1} parent=0 // pred_check
    _
  $region3: #{_forward_impl.1} parent=0 // pred_check_branch
    %8 = sbr.rel (0) target = $region5
  $region4: #{_forward_impl.1} parent=0 // pred_region
    _
  $region5: #{_forward_impl.1} parent=0 // pred_fallthru
    _
  // Predicated region
  $region6: #{_forward_impl.1} parent=0 // pred_check
    _
  $region7: #{_forward_impl.1} parent=0 // pred_check_branch
    %10 = sbr.rel (0) target = $region9
  $region8: #{_forward_impl.1} parent=0 // pred_region
    _
  $region9: #{_forward_impl.1} parent=0 // pred_fallthru
    _
  %v11 = vld [vmem:[%s0] sm:$0xf]
  %v12 = vld [vmem:[%s1] sm:$0x3]
  %v14 = vlaneseq
  %v15 = vshrl.u32 %v14, 7
  %v16 = vsub.s32 0, %v15
  %v17 = vrot.slane %v12, %v16
  %v18 = vlaneseq
  %v19 = vshrl.u32 %v18, 7
  %v20 = vsub.s32 1, %v19
  %v21 = vrot.slane %v12, %v20
  %v22 = vcombine.low %v17, %v21
  %v24 = vunpack.c.l.s4 1983009808
  %v25 = vunpack.c.0.s8 %v24
  %v26 = vlaneseq
  %v27 = vshrl.u32 %v26, 7
  %v28 = vsub.s32 %v25, %v27
  %v29 = vrot.slane %v22, %v28
  %v31 = vadd.f32 %v11, %v29
  %32 = vst [vmem:[%s2] sm:$0xf] %v31
  // Predicated region
  $region10: #{_forward_impl.1} parent=0 // pred_check
    _
  $region11: #{_forward_impl.1} parent=0 // pred_check_branch
    %34 = sbr.rel (0) target = $region13
  $region12: #{_forward_impl.1} parent=0 // pred_region
    _
  $region13: #{_forward_impl.1} parent=0 // pred_fallthru
    _
  // Predicated region
  $region14: #{_forward_impl.1} parent=0 // pred_check
    _
  $region15: #{_forward_impl.1} parent=0 // pred_check_branch
    %36 = sbr.rel (0) target = $region17
  $region16: #{_forward_impl.1} parent=0 // pred_region
    _
  $region17: #{_forward_impl.1} parent=0 // pred_fallthru
    _

</llo_original>
